<compile_context>
chip_gen: v7x
topology: tpu7x:2x2x1
jax: 0.10.0
libtpu: 0.0.40
codegen_flags: <defaults>
</compile_context>

<pallas_src>
import functools

import jax
import jax.numpy as jnp
from jax.experimental import pallas as pl
from jax.experimental.pallas import tpu as pltpu


def _round_up(x, m):
    return (x + m - 1) // m * m


def linear_kernel(x_ref, w_ref, b_ref, o_ref):
    # x_ref: (tm, K) f32 streamed tile; w_ref: (K, Np) bf16 resident;
    # b_ref: (1, Np) f32 resident; o_ref: (tm, Np) f32.
    # Cast x to bf16 on the VPU (free slot vs extra DMA), MXU dot with f32
    # accumulation, VPU bias add, full-lane unmasked store.
    x_bf16 = x_ref[...].astype(jnp.bfloat16)
    acc = jnp.dot(x_bf16, w_ref[...], preferred_element_type=jnp.float32)
    o_ref[...] = (acc + b_ref[...]).astype(o_ref.dtype)


def prepare_params(weight, bias, *, lane=128):
    """One-time parameter prep (do NOT call per forward).

    weight: (N, K) f32 (nn.Linear convention), bias: (N,) f32.
    Returns (w_t (K, Np) bf16, b (1, Np) f32, N, K).
    Transpose to (K, N), zero-pad N to a lane multiple (K stays un-padded:
    the x block covers the full K, so no K padding is needed), cast W to bf16.
    Zero-padded output columns are sliced away, so semantics are unchanged.
    """
    N, K = weight.shape
    Np = _round_up(N, lane)
    w_t = jnp.zeros((K, Np), jnp.bfloat16).at[:, :N].set(
        weight.T.astype(jnp.bfloat16))
    b2d = jnp.zeros((1, Np), jnp.float32).at[0, :N].set(
        bias.astype(jnp.float32))
    return w_t, b2d, N, K


def _vmem_cap_bytes():
    # Generation-aware ceiling: v5e/v6e have 128 MiB physical VMEM, v7x 64 MiB.
    try:
        cap = int(pltpu.get_tpu_info().vmem_capacity_bytes)
    except Exception:
        cap = 64 * 1024 * 1024  # conservative fallback (v7x-sized)
    return (cap * 3) // 4       # headroom for compiler-internal scratch


@functools.partial(jax.jit, static_argnames=("n_out", "k_in"))
def linear_model_forward(x, w_t, b2d, *, n_out, k_in):
    """Pallas equivalent of LinearModel.forward.

    x:    (B, C, H, W) or (B, K) float32
    w_t:  (K, Np) bf16  from prepare_params
    b2d:  (1, Np) f32   from prepare_params
    """
    B = x.shape[0]
    x2d = x.reshape(B, -1)          # row-major flatten == torch .view
    assert x2d.shape[1] == k_in
    K, Np = w_t.shape

    # Batch (M) tile:
    #  * B <= 8: one block equal to the full array (always legal, no padding).
    #  * larger B: up to 512 rows per tile (overhead-bound below ~512),
    #    and at least 2 grid steps once B >= 16 so v7x megacore shards it.
    if B <= 8:
        tm = B
    else:
        tm = min(512, _round_up(B, 8))
        if B >= 16:
            tm = min(tm, _round_up(pl.cdiv(B, 2), 8))
    grid_m = pl.cdiv(B, tm)

    # VMEM budget: double-buffered f32 x/out tiles + resident W/bias,
    # 2x headroom, clamped to the chip generation's physical capacity.
    need = 2 * (tm * K * 4 + tm * Np * 4) + K * Np * 2 + Np * 4
    vmem_limit = int(min(_vmem_cap_bytes(), max(2 * need, 16 * 1024 * 1024)))

    cost = pl.CostEstimate(
        flops=2 * B * K * Np,
        transcendentals=0,
        bytes_accessed=B * K * 4 + K * Np * 2 + Np * 4 + B * Np * 4,
    )

    out_padded = pl.pallas_call(
        linear_kernel,
        out_shape=jax.ShapeDtypeStruct((B, Np), jnp.float32),
        grid_spec=pl.GridSpec(
            grid=(grid_m,),
            in_specs=[
                pl.BlockSpec((tm, K), lambda i: (i, 0)),   # x tile, full K, f32
                pl.BlockSpec((K, Np), lambda i: (0, 0)),   # W, grid-invariant
                pl.BlockSpec((1, Np), lambda i: (0, 0)),   # bias, grid-invariant
            ],
            out_specs=pl.BlockSpec((tm, Np), lambda i: (i, 0)),
        ),
        compiler_params=pltpu.CompilerParams(
            dimension_semantics=("parallel",),
            vmem_limit_bytes=vmem_limit,
        ),
        cost_estimate=cost,
    )(x2d, w_t, b2d)

    # Only a lane slice (no batch padding to undo). Consumers that can read
    # 128-wide logits should take out_padded directly to skip this copy.
    return out_padded[:, :n_out]


def init_params(num_class=10, in_features=784):
    # Deterministic init matching torch.nn.init.uniform_(a=0.0, b=0.01).
    # (Distribution-matched, not bit-identical to torch RNG.)
    kw, kb = jax.random.split(jax.random.PRNGKey(42))
    weight = jax.random.uniform(kw, (num_class, in_features),
                                dtype=jnp.float32, minval=0.0, maxval=0.01)
    bias = jax.random.uniform(kb, (num_class,),
                              dtype=jnp.float32, minval=0.0, maxval=0.01)
    return weight, bias


if __name__ == "__main__":
    # MNIST-shaped input: (batch=2, channels=1, 28, 28) -> flatten to 784.
    B, C, H, W = 2, 1, 28, 28
    num_class = 10

    x = jax.random.normal(jax.random.PRNGKey(0), (B, C, H, W), dtype=jnp.float32)
    weight, bias = init_params(num_class=num_class, in_features=C * H * W)

    # One-time parameter prep (transpose / N-pad / bf16 cast).
    w_t, b2d, n_out, k_in = prepare_params(weight, bias)

    out = linear_model_forward(x, w_t, b2d, n_out=n_out, k_in=k_in)
    out = jax.block_until_ready(out)

    # Sanity check against plain-JAX f32 reference (tol loosened for bf16 MXU).
    ref = x.reshape(B, -1) @ weight.T + bias
    assert out.shape == (B, num_class)
    assert jnp.allclose(out, ref, atol=1e-2, rtol=1e-2), (
        f"max abs err={float(jnp.max(jnp.abs(out - ref)))}")

    print("KERNEL_OK")
</pallas_src>

<mosaic_0001>
module attributes {stable_mosaic.version = 11 : i64} {
  func.func @linear_kernel(%arg0: i32, %arg1: memref<2x784xf32, #tpu.memory_space<vmem>>, %arg2: memref<784x128xbf16, #tpu.memory_space<vmem>>, %arg3: memref<1x128xf32, #tpu.memory_space<vmem>>, %arg4: memref<2x128xf32, #tpu.memory_space<vmem>>) attributes {dimension_semantics = [#tpu.dimension_semantics<parallel>], iteration_bounds = array<i64: 1>, scalar_prefetch = 0 : i64, scratch_operands = 0 : i64, tpu.core_type = #tpu.core_type<tc>, window_params = [{transform_indices = @transform_0, window_bounds = array<i64: 2, 784>}, {pipeline_mode = #tpu.pipeline_mode<synchronous>, transform_indices = @transform_1, window_bounds = array<i64: 784, 128>}, {pipeline_mode = #tpu.pipeline_mode<synchronous>, transform_indices = @transform_2, window_bounds = array<i64: 1, 128>}, {transform_indices = @transform_3, window_bounds = array<i64: 2, 128>}]} {
    %c0 = arith.constant 0 : index
    %c0_0 = arith.constant 0 : index
    %0 = vector.load %arg1[%c0, %c0_0] : memref<2x784xf32, #tpu.memory_space<vmem>>, vector<2x784xf32>
    %1 = arith.truncf %0 : vector<2x784xf32> to vector<2x784xbf16>
    %c0_1 = arith.constant 0 : index
    %c0_2 = arith.constant 0 : index
    %2 = vector.load %arg2[%c0_1, %c0_2] : memref<784x128xbf16, #tpu.memory_space<vmem>>, vector<784x128xbf16>
    %cst = arith.constant dense<0.000000e+00> : vector<2x128xf32>
    %3 = tpu.matmul %1, %2, %cst {dimension_numbers = #tpu.dot_dimension_numbers<[1], [0], [0], [1], [0, 0, 1, 1], [], []>} : vector<2x784xbf16>, vector<784x128xbf16>, vector<2x128xf32> -> vector<2x128xf32>
    %c0_3 = arith.constant 0 : index
    %c0_4 = arith.constant 0 : index
    %4 = vector.load %arg3[%c0_3, %c0_4] : memref<1x128xf32, #tpu.memory_space<vmem>>, vector<1x128xf32>
    %5 = vector.broadcast %4 : vector<1x128xf32> to vector<2x128xf32>
    %6 = arith.addf %3, %5 : vector<2x128xf32>
    %c0_5 = arith.constant 0 : index
    %c0_6 = arith.constant 0 : index
    %7 = vector.load %arg4[%c0_5, %c0_6] : memref<2x128xf32, #tpu.memory_space<vmem>>, vector<2x128xf32>
    tpu.vector_store %arg4[%c0_5, %c0_6], %6 {strides = array<i32>} : memref<2x128xf32, #tpu.memory_space<vmem>>, vector<2x128xf32>,
    return
  }
  func.func @transform_0(%arg0: i32) -> (i32, i32) {
    %c0_i32 = arith.constant 0 : i32
    %c0_i32_0 = arith.constant 0 : i32
    return %arg0, %c0_i32 : i32, i32
  }
  func.func @transform_1(%arg0: i32) -> (i32, i32) {
    %c0_i32 = arith.constant 0 : i32
    %c0_i32_0 = arith.constant 0 : i32
    %c0_i32_1 = arith.constant 0 : i32
    return %c0_i32, %c0_i32_0 : i32, i32
  }
  func.func @transform_2(%arg0: i32) -> (i32, i32) {
    %c0_i32 = arith.constant 0 : i32
    %c0_i32_0 = arith.constant 0 : i32
    %c0_i32_1 = arith.constant 0 : i32
    return %c0_i32, %c0_i32_0 : i32, i32
  }
  func.func @transform_3(%arg0: i32) -> (i32, i32) {
    %c0_i32 = arith.constant 0 : i32
    %c0_i32_0 = arith.constant 0 : i32
    return %arg0, %c0_i32 : i32, i32
  }
}

</mosaic_0001>

<llo_original>
// kernel: linear_model_forward.1
$region0: #{linear_model_forward.1}
  #allocation0 [shape = 'u32[]', space=smem, size = 0x4, offset = 0x4, fixed_abs, tag = 'smem constant byte address 0x4 - core index']
  #allocation1 [shape = 'u32[144,128]{1,0:T(1,128)}', space=vmem, size = 0x12000, scoped, tag = 'internal scratch']
  %s0 = inlined_call_operand.vmem [shape: f32[2,784], index: 0, kind: input, shape index: {}]
  %s1 = inlined_call_operand.hbm [shape: bf16[784,128], index: 1, kind: input, shape index: {}]
  %s2 = inlined_call_operand.vmem [shape: f32[1,128], index: 2, kind: input, shape index: {}]
  %s3 = inlined_call_operand.hbm [shape: f32[2,128], index: 3, kind: output, shape index: {}]
  %s4 = sld [smem:[#allocation0]]
  $region26: #{linear_model_forward.1} parent=0
    _
  %s6 = ssub.s32 1, %s4
  %s7 = scalar_select 0, %s6, %s4
  $region1: #{linear_model_forward.1} parent=0
    #allocation2 [shape = 'u8[200704]{0}', space=vmem, size = 0x31000, scoped, tag = 'input window, operand 1, single buffered']
    #allocation3 [shape = 's32[1]{0}', space=sflag, size = 0x4, scoped, tag = 'scoped memory for linear_model_forward.1']
    #allocation4 [shape = 's32[1]{0}', space=sflag, size = 0x4, scoped, tag = 'scoped memory for linear_model_forward.1']
    #allocation5 [shape = 'u8[1024]{0}', space=vmem, size = 0x400, scoped, tag = 'output window, operand 0, single buffered']
    %8 = vsyncpa [#allocation3], 0
    %9 = vsyncpa [#allocation4], 0
    // Predicated region
    $region2: #{linear_model_forward.1} parent=1 // pred_check
      _
    $region3: #{linear_model_forward.1} parent=1 // pred_check_branch
      %11 = sbr.rel (0) target = $region5
    $region4: #{linear_model_forward.1} parent=1 // pred_region
      _
    $region5: #{linear_model_forward.1} parent=1 // pred_fallthru
      _
    // Predicated region
    $region6: #{linear_model_forward.1} parent=1 // pred_check
      _
    $region7: #{linear_model_forward.1} parent=1 // pred_check_branch
      %13 = sbr.rel (0) target = $region9
    $region8: #{linear_model_forward.1} parent=1 // pred_region
      %s15 = ssub.s32 6272, 6272
      %16 = vsyncadd [#allocation3], %s15
      %s17 = sshll.u32 [#allocation2], 4
      %s18 = int_to_ptr.vmem [resolvable:$true] %s17
      %23 = dma.hbm_to_vmem [thread:$0]  %s1, 6272, %s18, [#allocation3], 64, 64, 4
    $region9: #{linear_model_forward.1} parent=1 // pred_fallthru
      _
    // Predicated region
    $region10: #{linear_model_forward.1} parent=1 // pred_check
      _
    $region11: #{linear_model_forward.1} parent=1 // pred_check_branch
      %25 = sbr.rel (0) target = $region13
    $region12: #{linear_model_forward.1} parent=1 // pred_region
      _
    $region13: #{linear_model_forward.1} parent=1 // pred_fallthru
      _
    // Predicated region
    $region14: #{linear_model_forward.1} parent=1 // pred_check
      _
    $region15: #{linear_model_forward.1} parent=1 // pred_check_branch
      %27 = sbr.rel (0) target = $region17
    $region16: #{linear_model_forward.1} parent=1 // pred_region
      %28 = dma.done [#allocation3], 6272
    $region17: #{linear_model_forward.1} parent=1 // pred_fallthru
      _
    %v30 = vld [vmem:[%s0] sm:$0xff]
    %v31 = vld [vmem:[%s0 + $0x8] sm:$0x3f]
    %v34 = vcombine.high %v30, %v30
    %v36 = vunpack.c.l.s4 1983009808
    %v37 = vunpack.c.0.s8 %v36
    %v38 = vlaneseq
    %v39 = vshrl.u32 %v38, 7
    %v40 = vsub.s32 %v37, %v39
    %v41 = vrot.slane %v30, %v40
    %v43 = vunpack.c.l.s4 1983009808
    %v44 = vunpack.c.0.s8 %v43
    %v45 = vlaneseq
    %v46 = vshrl.u32 %v45, 7
    %v47 = vsub.s32 %v44, %v46
    %v48 = vrot.slane %v34, %v47
    %v49 = vcombine.high %v41, %v41
    %v50 = vcombine.high %v48, %v48
    %v51 = vcombine.high %v31, %v31
    %v53 = vunpack.c.l.s4 1983009808
    %v54 = vunpack.c.0.s8 %v53
    %v55 = vlaneseq
    %v56 = vshrl.u32 %v55, 7
    %v57 = vsub.s32 %v54, %v56
    %v58 = vrot.slane %v31, %v57
    %v60 = vunpack.c.l.s4 1983009808
    %v61 = vunpack.c.0.s8 %v60
    %v62 = vlaneseq
    %v63 = vshrl.u32 %v62, 7
    %v64 = vsub.s32 %v61, %v63
    %v65 = vrot.slane %v51, %v64
    %v66 = vcombine.high %v58, %v58
    %v74 = vpack.c.bf16 %v41, %v41
    %v75 = vpack.c.bf16 %v49, %v49
    %v76 = vpack.c.bf16 %v48, %v48
    %v77 = vpack.c.bf16 %v50, %v50
    %v78 = vpack.c.bf16 %v58, %v58
    %v79 = vpack.c.bf16 %v66, %v66
    %v80 = vpack.c.bf16 %v65, %v65
    %v81 = vld [vmem:[#allocation2] sm:$0xf]
    %v82 = vld [vmem:[#allocation2 + $0x4] sm:$0xf]
    %v83 = vld [vmem:[#allocation2 + $0x8] sm:$0xf]
    %v84 = vld [vmem:[#allocation2 + $0xc] sm:$0xf]
    %v85 = vld [vmem:[#allocation2 + $0x10] sm:$0xf]
    %v86 = vld [vmem:[#allocation2 + $0x14] sm:$0xf]
    %v87 = vld [vmem:[#allocation2 + $0x18] sm:$0xf]
    %v88 = vld [vmem:[#allocation2 + $0x1c] sm:$0xf]
    %v89 = vld [vmem:[#allocation2 + $0x20] sm:$0xf]
    %v90 = vld [vmem:[#allocation2 + $0x24] sm:$0xf]
    %v91 = vld [vmem:[#allocation2 + $0x28] sm:$0xf]
    %v92 = vld [vmem:[#allocation2 + $0x2c] sm:$0xf]
    %v93 = vld [vmem:[#allocation2 + $0x30] sm:$0xf]
    %v94 = vld [vmem:[#allocation2 + $0x34] sm:$0xf]
    %v95 = vld [vmem:[#allocation2 + $0x38] sm:$0xf]
    %v96 = vld [vmem:[#allocation2 + $0x3c] sm:$0xf]
    %v97 = vld [vmem:[#allocation2 + $0x40] sm:$0xf]
    %v98 = vld [vmem:[#allocation2 + $0x44] sm:$0xf]
    %v99 = vld [vmem:[#allocation2 + $0x48] sm:$0xf]
    %v100 = vld [vmem:[#allocation2 + $0x4c] sm:$0xf]
    %v101 = vld [vmem:[#allocation2 + $0x50] sm:$0xf]
    %v102 = vld [vmem:[#allocation2 + $0x54] sm:$0xf]
    %v103 = vld [vmem:[#allocation2 + $0x58] sm:$0xf]
    %v104 = vld [vmem:[#allocation2 + $0x5c] sm:$0xf]
    %v105 = vld [vmem:[#allocation2 + $0x60] sm:$0xf]
    %v106 = vld [vmem:[#allocation2 + $0x64] sm:$0xf]
    %v107 = vld [vmem:[#allocation2 + $0x68] sm:$0xf]
    %v108 = vld [vmem:[#allocation2 + $0x6c] sm:$0xf]
    %v109 = vld [vmem:[#allocation2 + $0x70] sm:$0xf]
    %v110 = vld [vmem:[#allocation2 + $0x74] sm:$0xf]
    %v111 = vld [vmem:[#allocation2 + $0x78] sm:$0xf]
    %v112 = vld [vmem:[#allocation2 + $0x7c] sm:$0xf]
    %v113 = vld [vmem:[#allocation2 + $0x80] sm:$0xf]
    %v114 = vld [vmem:[#allocation2 + $0x84] sm:$0xf]
    %v115 = vld [vmem:[#allocation2 + $0x88] sm:$0xf]
    %v116 = vld [vmem:[#allocation2 + $0x8c] sm:$0xf]
    %v117 = vld [vmem:[#allocation2 + $0x90] sm:$0xf]
    %v118 = vld [vmem:[#allocation2 + $0x94] sm:$0xf]
    %v119 = vld [vmem:[#allocation2 + $0x98] sm:$0xf]
    %v120 = vld [vmem:[#allocation2 + $0x9c] sm:$0xf]
    %v121 = vld [vmem:[#allocation2 + $0xa0] sm:$0xf]
    %v122 = vld [vmem:[#allocation2 + $0xa4] sm:$0xf]
    %v123 = vld [vmem:[#allocation2 + $0xa8] sm:$0xf]
    %v124 = vld [vmem:[#allocation2 + $0xac] sm:$0xf]
    %v125 = vld [vmem:[#allocation2 + $0xb0] sm:$0xf]
    %v126 = vld [vmem:[#allocation2 + $0xb4] sm:$0xf]
    %v127 = vld [vmem:[#allocation2 + $0xb8] sm:$0xf]
    %v128 = vld [vmem:[#allocation2 + $0xbc] sm:$0xf]
    %v129 = vld [vmem:[#allocation2 + $0xc0] sm:$0xf]
    %v130 = vld [vmem:[#allocation2 + $0xc4] sm:$0xf]
    %v131 = vld [vmem:[#allocation2 + $0xc8] sm:$0xf]
    %v132 = vld [vmem:[#allocation2 + $0xcc] sm:$0xf]
    %v133 = vld [vmem:[#allocation2 + $0xd0] sm:$0xf]
    %v134 = vld [vmem:[#allocation2 + $0xd4] sm:$0xf]
    %v135 = vld [vmem:[#allocation2 + $0xd8] sm:$0xf]
    %v136 = vld [vmem:[#allocation2 + $0xdc] sm:$0xf]
    %v137 = vld [vmem:[#allocation2 + $0xe0] sm:$0xf]
    %v138 = vld [vmem:[#allocation2 + $0xe4] sm:$0xf]
    %v139 = vld [vmem:[#allocation2 + $0xe8] sm:$0xf]
    %v140 = vld [vmem:[#allocation2 + $0xec] sm:$0xf]
    %v141 = vld [vmem:[#allocation2 + $0xf0] sm:$0xf]
    %v142 = vld [vmem:[#allocation2 + $0xf4] sm:$0xf]
    %v143 = vld [vmem:[#allocation2 + $0xf8] sm:$0xf]
    %v144 = vld [vmem:[#allocation2 + $0xfc] sm:$0xf]
    %v145 = vld [vmem:[#allocation2 + $0x100] sm:$0xf]
    %v146 = vld [vmem:[#allocation2 + $0x104] sm:$0xf]
    %v147 = vld [vmem:[#allocation2 + $0x108] sm:$0xf]
    %v148 = vld [vmem:[#allocation2 + $0x10c] sm:$0xf]
    %v149 = vld [vmem:[#allocation2 + $0x110] sm:$0xf]
    %v150 = vld [vmem:[#allocation2 + $0x114] sm:$0xf]
    %v151 = vld [vmem:[#allocation2 + $0x118] sm:$0xf]
    %v152 = vld [vmem:[#allocation2 + $0x11c] sm:$0xf]
    %v153 = vld [vmem:[#allocation2 + $0x120] sm:$0xf]
    %v154 = vld [vmem:[#allocation2 + $0x124] sm:$0xf]
    %v155 = vld [vmem:[#allocation2 + $0x128] sm:$0xf]
    %v156 = vld [vmem:[#allocation2 + $0x12c] sm:$0xf]
    %v157 = vld [vmem:[#allocation2 + $0x130] sm:$0xf]
    %v158 = vld [vmem:[#allocation2 + $0x134] sm:$0xf]
    %v159 = vld [vmem:[#allocation2 + $0x138] sm:$0xf]
    %v160 = vld [vmem:[#allocation2 + $0x13c] sm:$0xf]
    %v161 = vld [vmem:[#allocation2 + $0x140] sm:$0xf]
    %v162 = vld [vmem:[#allocation2 + $0x144] sm:$0xf]
    %v163 = vld [vmem:[#allocation2 + $0x148] sm:$0xf]
    %v164 = vld [vmem:[#allocation2 + $0x14c] sm:$0xf]
    %v165 = vld [vmem:[#allocation2 + $0x150] sm:$0xf]
    %v166 = vld [vmem:[#allocation2 + $0x154] sm:$0xf]
    %v167 = vld [vmem:[#allocation2 + $0x158] sm:$0xf]
    %v168 = vld [vmem:[#allocation2 + $0x15c] sm:$0xf]
    %v169 = vld [vmem:[#allocation2 + $0x160] sm:$0xf]
    %v170 = vld [vmem:[#allocation2 + $0x164] sm:$0xf]
    %v171 = vld [vmem:[#allocation2 + $0x168] sm:$0xf]
    %v172 = vld [vmem:[#allocation2 + $0x16c] sm:$0xf]
    %v173 = vld [vmem:[#allocation2 + $0x170] sm:$0xf]
    %v174 = vld [vmem:[#allocation2 + $0x174] sm:$0xf]
    %v175 = vld [vmem:[#allocation2 + $0x178] sm:$0xf]
    %v176 = vld [vmem:[#allocation2 + $0x17c] sm:$0xf]
    %v177 = vld [vmem:[#allocation2 + $0x180] sm:$0xf]
    %v178 = vld [vmem:[#allocation2 + $0x184] sm:$0xf]
    %v179 = vld [vmem:[%s2] sm:$0x1]
    %v181 = vlaneseq
    %v182 = vshrl.u32 %v181, 7
    %v183 = vsub.s32 0, %v182
    %v184 = vrot.slane %v179, %v183
    %v284 = vunpack.c.l.b16 %v81
    %v285 = vunpack.c.l.b16 %v82
    %v286 = vunpack.c.l.b16 %v83
    %v287 = vunpack.c.l.b16 %v84
    %v288 = vunpack.c.l.b16 %v85
    %v289 = vunpack.c.l.b16 %v86
    %v290 = vunpack.c.l.b16 %v87
    %v291 = vunpack.c.l.b16 %v88
    %v292 = vunpack.c.l.b16 %v89
    %v293 = vunpack.c.l.b16 %v90
    %v294 = vunpack.c.l.b16 %v91
    %v295 = vunpack.c.l.b16 %v92
    %v296 = vunpack.c.l.b16 %v93
    %v297 = vunpack.c.l.b16 %v94
    %v298 = vunpack.c.l.b16 %v95
    %v299 = vunpack.c.l.b16 %v96
    %v300 = vunpack.c.l.b16 %v97
    %v301 = vunpack.c.l.b16 %v98
    %v302 = vunpack.c.l.b16 %v99
    %v303 = vunpack.c.l.b16 %v100
    %v304 = vunpack.c.l.b16 %v101
    %v305 = vunpack.c.l.b16 %v102
    %v306 = vunpack.c.l.b16 %v103
    %v307 = vunpack.c.l.b16 %v104
    %v308 = vunpack.c.l.b16 %v105
    %v309 = vunpack.c.l.b16 %v106
    %v310 = vunpack.c.l.b16 %v107
    %v311 = vunpack.c.l.b16 %v108
    %v312 = vunpack.c.l.b16 %v109
    %v313 = vunpack.c.l.b16 %v110
    %v314 = vunpack.c.l.b16 %v111
    %v315 = vunpack.c.l.b16 %v112
    %v316 = vunpack.c.l.b16 %v113
    %v317 = vunpack.c.l.b16 %v114
    %v318 = vunpack.c.l.b16 %v115
    %v319 = vunpack.c.l.b16 %v116
    %v320 = vunpack.c.l.b16 %v117
    %v321 = vunpack.c.l.b16 %v118
    %v322 = vunpack.c.l.b16 %v119
    %v323 = vunpack.c.l.b16 %v120
    %v324 = vunpack.c.l.b16 %v121
    %v325 = vunpack.c.l.b16 %v122
    %v326 = vunpack.c.l.b16 %v123
    %v327 = vunpack.c.l.b16 %v124
    %v328 = vunpack.c.l.b16 %v125
    %v329 = vunpack.c.l.b16 %v126
    %v330 = vunpack.c.l.b16 %v127
    %v331 = vunpack.c.l.b16 %v128
    %v332 = vunpack.c.l.b16 %v129
    %v333 = vunpack.c.l.b16 %v130
    %v334 = vunpack.c.l.b16 %v131
    %v335 = vunpack.c.l.b16 %v132
    %v336 = vunpack.c.l.b16 %v133
    %v337 = vunpack.c.l.b16 %v134
    %v338 = vunpack.c.l.b16 %v135
    %v339 = vunpack.c.l.b16 %v136
    %v340 = vunpack.c.l.b16 %v137
    %v341 = vunpack.c.l.b16 %v138
    %v342 = vunpack.c.l.b16 %v139
    %v343 = vunpack.c.l.b16 %v140
    %v344 = vunpack.c.l.b16 %v141
    %v345 = vunpack.c.l.b16 %v142
    %v346 = vunpack.c.l.b16 %v143
    %v347 = vunpack.c.l.b16 %v144
    %v348 = vunpack.c.l.b16 %v145
    %v349 = vunpack.c.l.b16 %v146
    %v350 = vunpack.c.l.b16 %v147
    %v351 = vunpack.c.l.b16 %v148
    %v352 = vunpack.c.l.b16 %v149
    %v353 = vunpack.c.l.b16 %v150
    %v354 = vunpack.c.l.b16 %v151
    %v355 = vunpack.c.l.b16 %v152
    %v356 = vunpack.c.l.b16 %v153
    %v357 = vunpack.c.l.b16 %v154
    %v358 = vunpack.c.l.b16 %v155
    %v359 = vunpack.c.l.b16 %v156
    %v360 = vunpack.c.l.b16 %v157
    %v361 = vunpack.c.l.b16 %v158
    %v362 = vunpack.c.l.b16 %v159
    %v363 = vunpack.c.l.b16 %v160
    %v364 = vunpack.c.l.b16 %v161
    %v365 = vunpack.c.l.b16 %v162
    %v366 = vunpack.c.l.b16 %v163
    %v367 = vunpack.c.l.b16 %v164
    %v368 = vunpack.c.l.b16 %v165
    %v369 = vunpack.c.l.b16 %v166
    %v370 = vunpack.c.l.b16 %v167
    %v371 = vunpack.c.l.b16 %v168
    %v372 = vunpack.c.l.b16 %v169
    %v373 = vunpack.c.l.b16 %v170
    %v374 = vunpack.c.l.b16 %v171
    %v375 = vunpack.c.l.b16 %v172
    %v376 = vunpack.c.l.b16 %v173
    %v377 = vunpack.c.l.b16 %v174
    %v378 = vunpack.c.l.b16 %v175
    %v379 = vunpack.c.l.b16 %v176
    %v380 = vunpack.c.l.b16 %v177
    %v381 = vunpack.c.l.b16 %v178
    %v382 = vpack.c.b16 %v285, %v284
    %v383 = vpack.c.b16 %v287, %v286
    %v384 = vpack.c.b16 %v289, %v288
    %v385 = vpack.c.b16 %v291, %v290
    %v386 = vpack.c.b16 %v293, %v292
    %v387 = vpack.c.b16 %v295, %v294
    %v388 = vpack.c.b16 %v297, %v296
    %v389 = vpack.c.b16 %v299, %v298
    %v390 = vpack.c.b16 %v301, %v300
    %v391 = vpack.c.b16 %v303, %v302
    %v392 = vpack.c.b16 %v305, %v304
    %v393 = vpack.c.b16 %v307, %v306
    %v394 = vpack.c.b16 %v309, %v308
    %v395 = vpack.c.b16 %v311, %v310
    %v396 = vpack.c.b16 %v313, %v312
    %v397 = vpack.c.b16 %v315, %v314
    %v398 = vpack.c.b16 %v317, %v316
    %v399 = vpack.c.b16 %v319, %v318
    %v400 = vpack.c.b16 %v321, %v320
    %v401 = vpack.c.b16 %v323, %v322
    %v402 = vpack.c.b16 %v325, %v324
    %v403 = vpack.c.b16 %v327, %v326
    %v404 = vpack.c.b16 %v329, %v328
    %v405 = vpack.c.b16 %v331, %v330
    %v406 = vpack.c.b16 %v333, %v332
    %v407 = vpack.c.b16 %v335, %v334
    %v408 = vpack.c.b16 %v337, %v336
    %v409 = vpack.c.b16 %v339, %v338
    %v410 = vpack.c.b16 %v341, %v340
    %v411 = vpack.c.b16 %v343, %v342
    %v412 = vpack.c.b16 %v345, %v344
    %v413 = vpack.c.b16 %v347, %v346
    %v414 = vpack.c.b16 %v349, %v348
    %v415 = vpack.c.b16 %v351, %v350
    %v416 = vpack.c.b16 %v353, %v352
    %v417 = vpack.c.b16 %v355, %v354
    %v418 = vpack.c.b16 %v357, %v356
    %v419 = vpack.c.b16 %v359, %v358
    %v420 = vpack.c.b16 %v361, %v360
    %v421 = vpack.c.b16 %v363, %v362
    %v422 = vpack.c.b16 %v365, %v364
    %v423 = vpack.c.b16 %v367, %v366
    %v424 = vpack.c.b16 %v369, %v368
    %v425 = vpack.c.b16 %v371, %v370
    %v426 = vpack.c.b16 %v373, %v372
    %v427 = vpack.c.b16 %v375, %v374
    %v428 = vpack.c.b16 %v377, %v376
    %v429 = vpack.c.b16 %v379, %v378
    %v430 = vpack.c.b16 %v381, %v380
    %vm480 = vcmask 130048
    %v482 = vsel %vm480, %v80, 0
    %484 = vmatprep.subr.bf16.mxu0 0
    %485 = vmatpush1.bf16.msra.mxu0 %v382
    %486 = vmatprep.subr.bf16.mxu0 0
    %487 = vmatpush1.bf16.msra.mxu0 %v383
    %488 = vmatprep.subr.bf16.mxu0 0
    %489 = vmatpush1.bf16.msra.mxu0 %v384
    %490 = vmatprep.subr.bf16.mxu0 0
    %491 = vmatpush1.bf16.msra.mxu0 %v385
    %492 = vmatprep.subr.bf16.mxu0 0
    %493 = vmatpush1.bf16.msra.mxu0 %v386
    %494 = vmatprep.subr.bf16.mxu0 0
    %495 = vmatpush1.bf16.msra.mxu0 %v387
    %496 = vmatprep.subr.bf16.mxu0 0
    %497 = vmatpush1.bf16.msra.mxu0 %v388
    %498 = vmatprep.subr.bf16.mxu0 0
    %499 = vmatpush1.bf16.msra.mxu0 %v389
    %500 = vmatprep.subr.bf16.mxu0 0
    %501 = vmatpush1.bf16.msra.mxu0 %v390
    %502 = vmatprep.subr.bf16.mxu0 0
    %503 = vmatpush1.bf16.msra.mxu0 %v391
    %504 = vmatprep.subr.bf16.mxu0 0
    %505 = vmatpush1.bf16.msra.mxu0 %v392
    %506 = vmatprep.subr.bf16.mxu0 0
    %507 = vmatpush1.bf16.msra.mxu0 %v393
    %508 = vmatprep.subr.bf16.mxu0 0
    %509 = vmatpush1.bf16.msra.mxu0 %v394
    %510 = vmatprep.subr.bf16.mxu0 0
    %511 = vmatpush1.bf16.msra.mxu0 %v395
    %512 = vmatprep.subr.bf16.mxu0 0
    %513 = vmatpush1.bf16.msra.mxu0 %v396
    %514 = vmatprep.subr.bf16.mxu0 0
    %515 = vmatpush1.bf16.msra.mxu0 %v397
    %516 = vmatprep.mubr.bf16.mxu0 %v75
    %517 = vmatmul.mubr.bf16.gmra.mrb[0].mxu0 %v74
    %v518 = vpop.f32.mrb[0].mxu0
    %v519 = vadd.f32 %v184, %v518
    %v520 = vpop.f32.mrb[0].mxu0
    %v521 = vpop.f32.mrb[0].mxu0
    %v522 = vpop.f32.mrb[0].mxu0
    %523 = vdwg.mxu0
    %524 = vmatprep.subr.bf16.mxu0 0
    %525 = vmatpush1.bf16.msra.mxu0 %v398
    %526 = vmatprep.subr.bf16.mxu0 0
    %527 = vmatpush1.bf16.msra.mxu0 %v399
    %528 = vmatprep.subr.bf16.mxu0 0
    %529 = vmatpush1.bf16.msra.mxu0 %v400
    %530 = vmatprep.subr.bf16.mxu0 0
    %531 = vmatpush1.bf16.msra.mxu0 %v401
    %532 = vmatprep.subr.bf16.mxu0 0
    %533 = vmatpush1.bf16.msra.mxu0 %v402
    %534 = vmatprep.subr.bf16.mxu0 0
    %535 = vmatpush1.bf16.msra.mxu0 %v403
    %536 = vmatprep.subr.bf16.mxu0 0
    %537 = vmatpush1.bf16.msra.mxu0 %v404
    %538 = vmatprep.subr.bf16.mxu0 0
    %539 = vmatpush1.bf16.msra.mxu0 %v405
    %540 = vmatprep.subr.bf16.mxu0 0
    %541 = vmatpush1.bf16.msra.mxu0 %v406
    %542 = vmatprep.subr.bf16.mxu0 0
    %543 = vmatpush1.bf16.msra.mxu0 %v407
    %544 = vmatprep.subr.bf16.mxu0 0
    %545 = vmatpush1.bf16.msra.mxu0 %v408
    %546 = vmatprep.subr.bf16.mxu0 0
    %547 = vmatpush1.bf16.msra.mxu0 %v409
    %548 = vmatprep.subr.bf16.mxu0 0
    %549 = vmatpush1.bf16.msra.mxu0 %v410
    %550 = vmatprep.subr.bf16.mxu0 0
    %551 = vmatpush1.bf16.msra.mxu0 %v411
    %552 = vmatprep.subr.bf16.mxu0 0
    %553 = vmatpush1.bf16.msra.mxu0 %v412
    %554 = vmatprep.subr.bf16.mxu0 0
    %555 = vmatpush1.bf16.msra.mxu0 %v413
    %556 = vmatprep.mubr.bf16.mxu0 %v77
    %557 = vmatmul.mubr.bf16.gmra.mrb[0].mxu0 %v76
    %v558 = vpop.f32.mrb[0].mxu0
    %v559 = vadd.f32 %v519, %v558
    %v560 = vpop.f32.mrb[0].mxu0
    %v561 = vpop.f32.mrb[0].mxu0
    %v562 = vpop.f32.mrb[0].mxu0
    %563 = vdwg.mxu0
    %564 = vmatprep.subr.bf16.mxu0 0
    %565 = vmatpush1.bf16.msra.mxu0 %v414
    %566 = vmatprep.subr.bf16.mxu0 0
    %567 = vmatpush1.bf16.msra.mxu0 %v415
    %568 = vmatprep.subr.bf16.mxu0 0
    %569 = vmatpush1.bf16.msra.mxu0 %v416
    %570 = vmatprep.subr.bf16.mxu0 0
    %571 = vmatpush1.bf16.msra.mxu0 %v417
    %572 = vmatprep.subr.bf16.mxu0 0
    %573 = vmatpush1.bf16.msra.mxu0 %v418
    %574 = vmatprep.subr.bf16.mxu0 0
    %575 = vmatpush1.bf16.msra.mxu0 %v419
    %576 = vmatprep.subr.bf16.mxu0 0
    %577 = vmatpush1.bf16.msra.mxu0 %v420
    %578 = vmatprep.subr.bf16.mxu0 0
    %579 = vmatpush1.bf16.msra.mxu0 %v421
    %580 = vmatprep.subr.bf16.mxu0 0
    %581 = vmatpush1.bf16.msra.mxu0 %v422
    %582 = vmatprep.subr.bf16.mxu0 0
    %583 = vmatpush1.bf16.msra.mxu0 %v423
    %584 = vmatprep.subr.bf16.mxu0 0
    %585 = vmatpush1.bf16.msra.mxu0 %v424
    %586 = vmatprep.subr.bf16.mxu0 0
    %587 = vmatpush1.bf16.msra.mxu0 %v425
    %588 = vmatprep.subr.bf16.mxu0 0
    %589 = vmatpush1.bf16.msra.mxu0 %v426
    %590 = vmatprep.subr.bf16.mxu0 0
    %591 = vmatpush1.bf16.msra.mxu0 %v427
    %592 = vmatprep.subr.bf16.mxu0 0
    %593 = vmatpush1.bf16.msra.mxu0 %v428
    %594 = vmatprep.subr.bf16.mxu0 0
    %595 = vmatpush1.bf16.msra.mxu0 %v429
    %596 = vmatprep.mubr.bf16.mxu0 %v79
    %597 = vmatmul.mubr.bf16.gmra.mrb[0].mxu0 %v78
    %v598 = vpop.f32.mrb[0].mxu0
    %v599 = vadd.f32 %v559, %v598
    %v600 = vpop.f32.mrb[0].mxu0
    %v601 = vpop.f32.mrb[0].mxu0
    %v602 = vpop.f32.mrb[0].mxu0
    %603 = vdwg.mxu0
    %604 = vmatprep.subr.bf16.mxu0 0
    %605 = vmatpush1.bf16.msra.mxu0 %v430
    %606 = vmatprep.subr.bf16.mxu0 0
    %607 = vmatpush1.bf16.msra.mxu0 0
    %608 = vmatprep.subr.bf16.mxu0 0
    %609 = vmatpush1.bf16.msra.mxu0 0
    %610 = vmatprep.subr.bf16.mxu0 0
    %611 = vmatpush1.bf16.msra.mxu0 0
    %612 = vmatprep.subr.bf16.mxu0 0
    %613 = vmatpush1.bf16.msra.mxu0 0
    %614 = vmatprep.subr.bf16.mxu0 0
    %615 = vmatpush1.bf16.msra.mxu0 0
    %616 = vmatprep.subr.bf16.mxu0 0
    %617 = vmatpush1.bf16.msra.mxu0 0
    %618 = vmatprep.subr.bf16.mxu0 0
    %619 = vmatpush1.bf16.msra.mxu0 0
    %620 = vmatprep.subr.bf16.mxu0 0
    %621 = vmatpush1.bf16.msra.mxu0 0
    %622 = vmatprep.subr.bf16.mxu0 0
    %623 = vmatpush1.bf16.msra.mxu0 0
    %624 = vmatprep.subr.bf16.mxu0 0
    %625 = vmatpush1.bf16.msra.mxu0 0
    %626 = vmatprep.subr.bf16.mxu0 0
    %627 = vmatpush1.bf16.msra.mxu0 0
    %628 = vmatprep.subr.bf16.mxu0 0
    %629 = vmatpush1.bf16.msra.mxu0 0
    %630 = vmatprep.subr.bf16.mxu0 0
    %631 = vmatpush1.bf16.msra.mxu0 0
    %632 = vmatprep.subr.bf16.mxu0 0
    %633 = vmatpush1.bf16.msra.mxu0 0
    %634 = vmatprep.subr.bf16.mxu0 0
    %635 = vmatpush1.bf16.msra.mxu0 0
    %636 = vmatprep.mubr.bf16.mxu0 0
    %637 = vmatmul.mubr.bf16.gmra.mrb[0].mxu0 %v482
    %v638 = vpop.f32.mrb[0].mxu0
    %v639 = vadd.f32 %v599, %v638
    %v640 = vpop.f32.mrb[0].mxu0
    %v641 = vpop.f32.mrb[0].mxu0
    %v642 = vpop.f32.mrb[0].mxu0
    %643 = vdwg.mxu0
    %644 = vst [vmem:[#allocation5] sm:$0x3] %v639
    // Predicated region
    $region18: #{linear_model_forward.1} parent=1 // pred_check
      _
    $region19: #{linear_model_forward.1} parent=1 // pred_check_branch
      %646 = sbr.rel (0) target = $region21
    $region20: #{linear_model_forward.1} parent=1 // pred_region
      %s648 = ssub.s32 32, 32
      %649 = vsyncadd [#allocation4], %s648
      %s651 = sshll.u32 [#allocation5], 4
      %s652 = int_to_ptr.vmem [resolvable:$true] %s651
      %654 = dma.vmem_to_hbm [thread:$0]  %s652, 32, %s3, [#allocation4]
    $region21: #{linear_model_forward.1} parent=1 // pred_fallthru
      _
    // Predicated region
    $region22: #{linear_model_forward.1} parent=1 // pred_check
      _
    $region23: #{linear_model_forward.1} parent=1 // pred_check_branch
      %656 = sbr.rel (0) target = $region25
    $region24: #{linear_model_forward.1} parent=1 // pred_region
      %657 = dma.done [#allocation4], 32
    $region25: #{linear_model_forward.1} parent=1 // pred_fallthru
      _
    %658 = vsyncpa [#allocation3], 1
    %659 = vsyncpa [#allocation4], 1

</llo_original>
